<compile_context>
chip_gen: v7x
topology: tpu7x:2x2x1
jax: 0.10.0
libtpu: 0.0.40
codegen_flags: <defaults>
</compile_context>

<pallas_src>
import functools

import jax
import jax.numpy as jnp
from jax.experimental import pallas as pl
from jax.experimental.pallas import tpu as pltpu


def _round_up(v, m):
    return ((v + m - 1) // m) * m


def _embed_kernel(x_ref, w_ref, b_ref, o_ref):
    # x_ref: (TM, 6*G), w_ref: (6*G, G*H), b_ref: (1, G*H), o_ref: (TM, G*H)
    acc = jnp.dot(x_ref[...], w_ref[...], preferred_element_type=jnp.float32)
    acc = acc + b_ref[...]                       # broadcast (1, G*H) -> (TM, G*H)
    o_ref[...] = jnp.maximum(acc, 0.0).astype(o_ref.dtype)


def _packed_linear_relu(xp, w_bd, b_t, *, tile_rows):
    """ReLU(xp @ w_bd + b_t) over packed rows. xp: (rows, 6G), w_bd: (6G, GH)."""
    rows, kp = xp.shape
    np_ = w_bd.shape[1]

    # Row-tile selection:
    #  * multiple of 8 (sublane) when tiling, capped at tile_rows,
    #  * once the problem is big enough, force >= 2 grid steps so the
    #    "parallel" axis shards across both v7x TensorCores,
    #  * tiny problems use a single (possibly ragged) full-extent block.
    if rows >= 256:
        tm = min(tile_rows, _round_up(pl.cdiv(rows, 2), 8))
    else:
        tm = rows
    grid = (pl.cdiv(rows, tm),)

    itemsize = jnp.dtype(xp.dtype).itemsize
    cost = pl.CostEstimate(
        flops=2 * rows * kp * np_,
        transcendentals=0,
        bytes_accessed=(xp.size + w_bd.size + b_t.size + rows * np_) * itemsize,
    )

    return pl.pallas_call(
        _embed_kernel,
        out_shape=jax.ShapeDtypeStruct((rows, np_), xp.dtype),
        grid=grid,
        in_specs=[
            # x tile: (tm, 6G); 6G equals the full packed feature dim -> legal.
            pl.BlockSpec((tm, kp), lambda i: (i, 0)),
            # weight / bias: full arrays, constant index_map (resident across
            # the grid, not re-DMA'd per step).
            pl.BlockSpec((kp, np_), lambda i: (0, 0)),
            pl.BlockSpec((1, np_), lambda i: (0, 0)),
        ],
        out_specs=pl.BlockSpec((tm, np_), lambda i: (i, 0)),
        compiler_params=pltpu.CompilerParams(
            dimension_semantics=("parallel",),   # shard M axis across TCs (v7x)
        ),
        cost_estimate=cost,
    )(xp, w_bd, b_t)


def _prep_params(weight, bias, group):
    # Block-diagonal weight: G copies of W on the diagonal -> one MXU matmul
    # computes G independent row-embeddings (output last dim G*H = 128).
    w_bd = jnp.kron(jnp.eye(group, dtype=weight.dtype), weight)   # (6G, GH)
    b_t = jnp.tile(bias, group).reshape(1, group * bias.shape[0])  # (1, GH)
    return w_bd, b_t


def _forward(x, weight, bias, w_bd, b_t, *, group, tile_rows):
    in_feat = x.shape[-1]
    hidden = weight.shape[1]
    lead_shape = x.shape[:-1]

    x2 = x.reshape(-1, in_feat)          # zero-copy
    m = x2.shape[0]
    g = group
    m_main = (m // g) * g                # g-aligned prefix (static under jit)

    pieces = []
    if m_main > 0:
        rows = m_main // g
        # Zero-copy pack: G consecutive rows -> one lane-dense "wide" row.
        xp = x2[:m_main].reshape(rows, g * in_feat)
        out_p = _packed_linear_relu(xp, w_bd, b_t, tile_rows=tile_rows)
        pieces.append(out_p.reshape(m_main, hidden))   # zero-copy unpack
    if m_main < m:
        # < g leftover rows: trivial jnp epilogue, no input pad / output slice.
        tail = jnp.maximum(x2[m_main:] @ weight + bias, 0.0).astype(x.dtype)
        pieces.append(tail)

    out = pieces[0] if len(pieces) == 1 else jnp.concatenate(pieces, axis=0)
    return out.reshape(*lead_shape, hidden)


@functools.partial(jax.jit, static_argnames=("group", "tile_rows"))
def ethucy_feature_extractor(x, weight, bias, *, group=4, tile_rows=8192):
    """y = ReLU(x @ weight + bias).

    x: (..., 6) float32; weight: (6, H) (pre-transposed vs torch's (H, 6));
    bias: (H,).  Returns (..., H).
    """
    w_bd, b_t = _prep_params(weight, bias, group)
    return _forward(x, weight, bias, w_bd, b_t, group=group, tile_rows=tile_rows)


def make_ethucy_feature_extractor(weight, bias, *, group=4, tile_rows=8192):
    """Hoist the (tiny) block-diagonal weight prep once per weight and return a
    jitted forward fn (per performance-review suggestion)."""
    w_bd, b_t = jax.tree.map(jax.device_put, _prep_params(weight, bias, group))

    @jax.jit
    def fwd(x):
        return _forward(x, weight, bias, w_bd, b_t,
                        group=group, tile_rows=tile_rows)

    return fwd


if __name__ == "__main__":
    # Small shapes consistent with the module: trajectory inputs (B, T, 6),
    # hidden_size = 32.
    batch, seq, in_feat, hidden = 2, 8, 6, 32

    key = jax.random.PRNGKey(0)
    kx, kw, kb, kx2 = jax.random.split(key, 4)

    x = jax.random.normal(kx, (batch, seq, in_feat), dtype=jnp.float32)

    # Deterministic synthetic params (mimic torch Linear's uniform init range).
    bound = 1.0 / jnp.sqrt(jnp.float32(in_feat))
    weight = jax.random.uniform(
        kw, (in_feat, hidden), minval=-bound, maxval=bound, dtype=jnp.float32
    )
    bias = jax.random.uniform(
        kb, (hidden,), minval=-bound, maxval=bound, dtype=jnp.float32
    )

    # Aligned path (m = 16, divisible by group=4): no pad, no slice, no concat.
    out = jax.block_until_ready(ethucy_feature_extractor(x, weight, bias))
    ref = jnp.maximum(jnp.einsum("btf,fh->bth", x, weight) + bias, 0.0)
    assert out.shape == (batch, seq, hidden)
    assert jnp.allclose(out, ref, atol=1e-4, rtol=1e-4)

    # Misaligned path (m = 150 = 4*37 + 2): kernel on the aligned prefix,
    # jnp epilogue on the 2-row tail.  Also exercises the hoisted-params factory.
    fwd = make_ethucy_feature_extractor(weight, bias)
    x_odd = jax.random.normal(kx2, (3, 50, in_feat), dtype=jnp.float32)
    out_odd = jax.block_until_ready(fwd(x_odd))
    ref_odd = jnp.maximum(jnp.einsum("btf,fh->bth", x_odd, weight) + bias, 0.0)
    assert out_odd.shape == (3, 50, hidden)
    assert jnp.allclose(out_odd, ref_odd, atol=1e-4, rtol=1e-4)

    print("KERNEL_OK")
</pallas_src>

<mosaic_0001>
module attributes {stable_mosaic.version = 11 : i64} {
  func.func @_embed_kernel(%arg0: i32, %arg1: memref<4x24xf32, #tpu.memory_space<vmem>>, %arg2: memref<24x128xf32, #tpu.memory_space<vmem>>, %arg3: memref<1x128xf32, #tpu.memory_space<vmem>>, %arg4: memref<4x128xf32, #tpu.memory_space<vmem>>) attributes {dimension_semantics = [#tpu.dimension_semantics<parallel>], iteration_bounds = array<i64: 1>, scalar_prefetch = 0 : i64, scratch_operands = 0 : i64, tpu.core_type = #tpu.core_type<tc>, window_params = [{transform_indices = @transform_0, window_bounds = array<i64: 4, 24>}, {pipeline_mode = #tpu.pipeline_mode<synchronous>, transform_indices = @transform_1, window_bounds = array<i64: 24, 128>}, {pipeline_mode = #tpu.pipeline_mode<synchronous>, transform_indices = @transform_2, window_bounds = array<i64: 1, 128>}, {transform_indices = @transform_3, window_bounds = array<i64: 4, 128>}]} {
    %c0 = arith.constant 0 : index
    %c0_0 = arith.constant 0 : index
    %0 = vector.load %arg1[%c0, %c0_0] : memref<4x24xf32, #tpu.memory_space<vmem>>, vector<4x24xf32>
    %c0_1 = arith.constant 0 : index
    %c0_2 = arith.constant 0 : index
    %1 = vector.load %arg2[%c0_1, %c0_2] : memref<24x128xf32, #tpu.memory_space<vmem>>, vector<24x128xf32>
    %cst = arith.constant dense<0.000000e+00> : vector<4x128xf32>
    %2 = tpu.matmul %0, %1, %cst {dimension_numbers = #tpu.dot_dimension_numbers<[1], [0], [0], [1], [0, 0, 1, 1], [], []>} : vector<4x24xf32>, vector<24x128xf32>, vector<4x128xf32> -> vector<4x128xf32>
    %c0_3 = arith.constant 0 : index
    %c0_4 = arith.constant 0 : index
    %3 = vector.load %arg3[%c0_3, %c0_4] : memref<1x128xf32, #tpu.memory_space<vmem>>, vector<1x128xf32>
    %4 = vector.broadcast %3 : vector<1x128xf32> to vector<4x128xf32>
    %5 = arith.addf %2, %4 : vector<4x128xf32>
    %cst_5 = arith.constant 0.000000e+00 : f32
    %6 = vector.broadcast %cst_5 : f32 to vector<4x128xf32>
    %7 = arith.maximumf %5, %6 : vector<4x128xf32>
    %c0_6 = arith.constant 0 : index
    %c0_7 = arith.constant 0 : index
    %8 = vector.load %arg4[%c0_6, %c0_7] : memref<4x128xf32, #tpu.memory_space<vmem>>, vector<4x128xf32>
    tpu.vector_store %arg4[%c0_6, %c0_7], %7 {strides = array<i32>} : memref<4x128xf32, #tpu.memory_space<vmem>>, vector<4x128xf32>,
    return
  }
  func.func @transform_0(%arg0: i32) -> (i32, i32) {
    %c0_i32 = arith.constant 0 : i32
    %c0_i32_0 = arith.constant 0 : i32
    return %arg0, %c0_i32 : i32, i32
  }
  func.func @transform_1(%arg0: i32) -> (i32, i32) {
    %c0_i32 = arith.constant 0 : i32
    %c0_i32_0 = arith.constant 0 : i32
    %c0_i32_1 = arith.constant 0 : i32
    return %c0_i32, %c0_i32_0 : i32, i32
  }
  func.func @transform_2(%arg0: i32) -> (i32, i32) {
    %c0_i32 = arith.constant 0 : i32
    %c0_i32_0 = arith.constant 0 : i32
    %c0_i32_1 = arith.constant 0 : i32
    return %c0_i32, %c0_i32_0 : i32, i32
  }
  func.func @transform_3(%arg0: i32) -> (i32, i32) {
    %c0_i32 = arith.constant 0 : i32
    %c0_i32_0 = arith.constant 0 : i32
    return %arg0, %c0_i32 : i32, i32
  }
}

</mosaic_0001>

<llo_original>
// kernel: tile.8
$region0: #{tile.8}
  #allocation0 [shape = 's32[1]{0}', space=sflag, size = 0x4, scoped, tag = 'scoped memory for tile.8']
  %s0 = inlined_call_operand.vmem [shape: f32[32], index: 0, kind: input, shape index: {}]
  %s1 = inlined_call_operand.vmem [shape: f32[4,32], index: 1, kind: output, shape index: {}]
  // Predicated region
  $region2: #{tile.8} parent=0 // pred_check
    _
  $region3: #{tile.8} parent=0 // pred_check_branch
    %3 = sbr.rel (0) target = $region5
  $region4: #{tile.8} parent=0 // pred_region
    _
  $region5: #{tile.8} parent=0 // pred_fallthru
    _
  %v4 = vld [vmem:[%s0] ss:$0 sm:$0xff]
  %5 = vst [vmem:[%s1] sm:$0xf] %v4

// kernel: tile.9
$region0: #{tile.9}
  %s0 = inlined_call_operand.vmem [shape: f32[4,32], index: 0, kind: input, shape index: {}]
  %s1 = inlined_call_operand.vmem [shape: f32[1,128], index: 1, kind: output, shape index: {}]
  $region1: #{tile.9} parent=0
    #allocation0 [shape = 'u8[4096]{0}', space=vmem, size = 0x1000, scoped, tag = 'scoped mem for output reshape']
    #allocation1 [shape = 'u8[4096]{0}', space=vmem, size = 0x1000, scoped, tag = 'scoped mem for input reshape']
    %s3 = sshllo.u32 0, 4
    %v4 = vld [vmem:[%s0] sm:%s3]
    %5 = vst [vmem:[#allocation1] sm:%s3] %v4
    %v6 = vld [vmem:[#allocation1] sm:$0x1]
    %vm7 = vcmask 261120
    %8 = vst.msk [vmem:[#allocation0] sm:$0x1] %vm7, %v6
    %s9 = scalar_lea.vmem [#allocation1], 3
    %v10 = vld [vmem:[%s9] sm:$0x1]
    %11 = vrot.lane.b32.xlu0 %v10, 96
    %v12 = vpop.permute.xlu0 %11
    %vm13 = vcmask 1048320
    %14 = vst.msk [vmem:[#allocation0] sm:$0x1] %vm13, %v12
    %s15 = scalar_lea.vmem [#allocation1], 2
    %v16 = vld [vmem:[%s15] sm:$0x1]
    %17 = vrot.lane.b32.xlu0 %v16, 64
    %v18 = vpop.permute.xlu0 %17
    %vm19 = vcmask 785920
    %20 = vst.msk [vmem:[#allocation0] sm:$0x1] %vm19, %v18
    %s21 = scalar_lea.vmem [#allocation1], 1
    %v22 = vld [vmem:[%s21] sm:$0x1]
    %23 = vrot.lane.b32.xlu0 %v22, 32
    %v24 = vpop.permute.xlu0 %23
    %vm25 = vcmask 523520
    %26 = vst.msk [vmem:[#allocation0] sm:$0x1] %vm25, %v24
    %s28 = sshllo.u32 0, 1
    %v30 = vld [vmem:[#allocation0] sm:%s28]
    %s31 = sshllo.u32 0, 1
    %32 = vst [vmem:[%s1] sm:%s31] %v30

// kernel: ethucy_feature_extractor.1
$region0: #{ethucy_feature_extractor.1}
  #allocation0 [shape = 'u32[]', space=smem, size = 0x4, offset = 0x4, fixed_abs, tag = 'smem constant byte address 0x4 - core index']
  #allocation1 [shape = 'u32[144,128]{1,0:T(1,128)}', space=vmem, size = 0x12000, scoped, tag = 'internal scratch']
  %s0 = inlined_call_operand.vmem [shape: f32[4,24], index: 0, kind: input, shape index: {}]
  %s1 = inlined_call_operand.vmem [shape: f32[24,128], index: 1, kind: input, shape index: {}]
  %s2 = inlined_call_operand.vmem [shape: f32[1,128], index: 2, kind: input, shape index: {}]
  %s3 = inlined_call_operand.vmem [shape: f32[4,128], index: 3, kind: output, shape index: {}]
  %s4 = sld [smem:[#allocation0]]
  $region22: #{ethucy_feature_extractor.1} parent=0
    _
  %s6 = ssub.s32 1, %s4
  %s7 = scalar_select 0, %s6, %s4
  // Predicated region
  $region2: #{ethucy_feature_extractor.1} parent=0 // pred_check
    _
  $region3: #{ethucy_feature_extractor.1} parent=0 // pred_check_branch
    %9 = sbr.rel (0) target = $region5
  $region4: #{ethucy_feature_extractor.1} parent=0 // pred_region
    _
  $region5: #{ethucy_feature_extractor.1} parent=0 // pred_fallthru
    _
  // Predicated region
  $region6: #{ethucy_feature_extractor.1} parent=0 // pred_check
    _
  $region7: #{ethucy_feature_extractor.1} parent=0 // pred_check_branch
    %11 = sbr.rel (0) target = $region9
  $region8: #{ethucy_feature_extractor.1} parent=0 // pred_region
    _
  $region9: #{ethucy_feature_extractor.1} parent=0 // pred_fallthru
    _
  // Predicated region
  $region10: #{ethucy_feature_extractor.1} parent=0 // pred_check
    _
  $region11: #{ethucy_feature_extractor.1} parent=0 // pred_check_branch
    %13 = sbr.rel (0) target = $region13
  $region12: #{ethucy_feature_extractor.1} parent=0 // pred_region
    _
  $region13: #{ethucy_feature_extractor.1} parent=0 // pred_fallthru
    _
  %v14 = vld [vmem:[%s0] sm:$0xf]
  %v15 = vld [vmem:[%s1] sm:$0xff]
  %v16 = vld [vmem:[%s1 + $0x8] sm:$0xff]
  %v17 = vld [vmem:[%s1 + $0x10] sm:$0xff]
  %v18 = vld [vmem:[%s2] sm:$0x1]
  %v20 = vlaneseq
  %v21 = vshrl.u32 %v20, 7
  %v22 = vsub.s32 0, %v21
  %v23 = vrot.slane %v18, %v22
  %vm25 = vcmask 195584
  %v27 = vsel %vm25, %v14, 0
  %29 = vmatprep.subr.mxu0 0.0
  %30 = vmatpush1.msra.mxu0 %v15
  %31 = vmatprep.subr.mxu0 0.0
  %32 = vmatpush1.msra.mxu0 %v16
  %33 = vmatprep.subr.mxu0 0.0
  %34 = vmatpush1.msra.mxu0 %v17
  %35 = vmatprep.subr.mxu0 0.0
  %36 = vmatpush1.msra.mxu0 0.0
  %37 = vmatprep.subr.mxu0 0.0
  %38 = vmatpush1.msra.mxu0 0.0
  %39 = vmatprep.subr.mxu0 0.0
  %40 = vmatpush1.msra.mxu0 0.0
  %41 = vmatprep.subr.mxu0 0.0
  %42 = vmatpush1.msra.mxu0 0.0
  %43 = vmatprep.subr.mxu0 0.0
  %44 = vmatpush1.msra.mxu0 0.0
  %45 = vmatprep.subr.mxu0 0.0
  %46 = vmatpush1.msra.mxu0 0.0
  %47 = vmatprep.subr.mxu0 0.0
  %48 = vmatpush1.msra.mxu0 0.0
  %49 = vmatprep.subr.mxu0 0.0
  %50 = vmatpush1.msra.mxu0 0.0
  %51 = vmatprep.subr.mxu0 0.0
  %52 = vmatpush1.msra.mxu0 0.0
  %53 = vmatprep.subr.mxu0 0.0
  %54 = vmatpush1.msra.mxu0 0.0
  %55 = vmatprep.subr.mxu0 0.0
  %56 = vmatpush1.msra.mxu0 0.0
  %57 = vmatprep.subr.mxu0 0.0
  %58 = vmatpush1.msra.mxu0 0.0
  %59 = vmatprep.subr.mxu0 0.0
  %60 = vmatpush1.msra.mxu0 0.0
  %61 = vmatprep.subr.mxu0 0.0
  %62 = vmatpush1.msra.mxu0 0.0
  %63 = vmatprep.subr.mxu0 0.0
  %64 = vmatpush1.msra.mxu0 0.0
  %65 = vmatprep.subr.mxu0 0.0
  %66 = vmatpush1.msra.mxu0 0.0
  %67 = vmatprep.subr.mxu0 0.0
  %68 = vmatpush1.msra.mxu0 0.0
  %69 = vmatprep.subr.mxu0 0.0
  %70 = vmatpush1.msra.mxu0 0.0
  %71 = vmatprep.subr.mxu0 0.0
  %72 = vmatpush1.msra.mxu0 0.0
  %73 = vmatprep.subr.mxu0 0.0
  %74 = vmatpush1.msra.mxu0 0.0
  %75 = vmatprep.subr.mxu0 0.0
  %76 = vmatpush1.msra.mxu0 0.0
  %77 = vmatprep.subr.mxu0 0.0
  %78 = vmatpush1.msra.mxu0 0.0
  %79 = vmatprep.subr.mxu0 0.0
  %80 = vmatpush1.msra.mxu0 0.0
  %81 = vmatprep.subr.mxu0 0.0
  %82 = vmatpush1.msra.mxu0 0.0
  %83 = vmatprep.subr.mxu0 0.0
  %84 = vmatpush1.msra.mxu0 0.0
  %85 = vmatprep.subr.mxu0 0.0
  %86 = vmatpush1.msra.mxu0 0.0
  %87 = vmatprep.subr.mxu0 0.0
  %88 = vmatpush1.msra.mxu0 0.0
  %89 = vmatprep.subr.mxu0 0.0
  %90 = vmatpush1.msra.mxu0 0.0
  %91 = vmatprep.subr.mxu0 0.0
  %92 = vmatpush1.msra.mxu0 0.0
  %93 = vmatprep.mubr.f32.mxu0 0.0
  %94 = vmatmul.mubr.f32.gmra.mrb[0].mxu0 %v27
  %v95 = vpop.f32.mrb[0].mxu0
  %v96 = vadd.f32 %v23, %v95
  %v97 = vpop.f32.mrb[0].mxu0
  %98 = vdwg.mxu0
  %v99 = vmax.f32 %v96, 0.0
  %100 = vst [vmem:[%s3] sm:$0xf] %v99
  // Predicated region
  $region14: #{ethucy_feature_extractor.1} parent=0 // pred_check
    _
  $region15: #{ethucy_feature_extractor.1} parent=0 // pred_check_branch
    %102 = sbr.rel (0) target = $region17
  $region16: #{ethucy_feature_extractor.1} parent=0 // pred_region
    _
  $region17: #{ethucy_feature_extractor.1} parent=0 // pred_fallthru
    _
  // Predicated region
  $region18: #{ethucy_feature_extractor.1} parent=0 // pred_check
    _
  $region19: #{ethucy_feature_extractor.1} parent=0 // pred_check_branch
    %104 = sbr.rel (0) target = $region21
  $region20: #{ethucy_feature_extractor.1} parent=0 // pred_region
    _
  $region21: #{ethucy_feature_extractor.1} parent=0 // pred_fallthru
    _

</llo_original>
